<compile_context>
chip_gen: v5e
topology: v5e:2x2
jax: 0.10.0
libtpu: 0.0.40
codegen_flags: <defaults>
</compile_context>

<pallas_src>
import jax
import jax.numpy as jnp
import numpy as np
from jax.experimental import pallas as pl
from jax.experimental.pallas import tpu as pltpu


# ---------------------------------------------------------------------------
# Kernel 1: hoisted input projection  table[v] = E[v] @ W_ih^T + (b_ih + b_hh)
# Trivially parallel over vocab rows; one large MXU-friendly matmul instead of
# T tiny matmuls inside the serial recurrence.
# ---------------------------------------------------------------------------
def _proj_kernel(e_ref, w_ref, b_ref, o_ref):
    o_ref[...] = (jnp.dot(e_ref[...], w_ref[...],
                          preferred_element_type=jnp.float32)
                  + b_ref[...]).astype(o_ref.dtype)


def project_embedding_table(embedding_matrix, w_ih, b_ih, b_hh, *, rows_per_block=128):
    emb = jnp.asarray(embedding_matrix, jnp.float32)
    V, H = emb.shape
    G = 4 * H
    wih_t = jnp.asarray(w_ih, jnp.float32).T                                  # (H, 4H)
    bias = (jnp.asarray(b_ih, jnp.float32)
            + jnp.asarray(b_hh, jnp.float32)).reshape(1, G)

    vb = rows_per_block
    n_blocks = pl.cdiv(V, vb)
    V_pad = n_blocks * vb
    emb_p = jnp.pad(emb, ((0, V_pad - V), (0, 0)))

    table = pl.pallas_call(
        _proj_kernel,
        out_shape=jax.ShapeDtypeStruct((V_pad, G), jnp.float32),
        grid=(n_blocks,),
        in_specs=[pl.BlockSpec((vb, H), lambda v: (v, 0)),
                  pl.BlockSpec((H, G), lambda v: (0, 0)),
                  pl.BlockSpec((1, G), lambda v: (0, 0))],
        out_specs=pl.BlockSpec((vb, G), lambda v: (v, 0)),
        compiler_params=pltpu.CompilerParams(
            dimension_semantics=("parallel",),
            vmem_limit_bytes=32 * 1024 * 1024),
    )(emb_p, wih_t, bias)
    return table[:V]


# ---------------------------------------------------------------------------
# Kernel 2: the serial LSTM recurrence. One grid step = T_CHUNK timesteps.
# Gate order matches PyTorch: [i, f, g, o].
# ---------------------------------------------------------------------------
def _make_lstm_recurrence_kernel(seq_len, t_chunk):
    masked = (seq_len % t_chunk) != 0      # trace-time: only emit mask if T was padded

    def kernel(xw_ref, whh_ref, out_ref, h_ref, c_ref):
        c_idx = pl.program_id(0)

        # h_ref / c_ref have a constant block index -> resident in VMEM across the
        # whole time axis; they double as the recurrent state (no extra scratch).
        @pl.when(c_idx == 0)
        def _():
            h_ref[...] = jnp.zeros_like(h_ref)
            c_ref[...] = jnp.zeros_like(c_ref)

        H = h_ref.shape[-1]
        whh = whh_ref[...]                                   # (H, 4H), resident weight

        def step(s, carry):
            h, c = carry
            # pre-activation already contains x_t @ W_ih^T + (b_ih + b_hh)
            gates = xw_ref[s] + jnp.dot(h, whh, preferred_element_type=jnp.float32)
            i = jax.nn.sigmoid(gates[:, 0 * H:1 * H])
            f = jax.nn.sigmoid(gates[:, 1 * H:2 * H])
            g = jnp.tanh(gates[:, 2 * H:3 * H])
            o = jax.nn.sigmoid(gates[:, 3 * H:4 * H])
            c_new = f * c + i * g
            h_new = o * jnp.tanh(c_new)
            out_ref[s] = h_new.astype(out_ref.dtype)
            if masked:   # keep h_n / c_n exact when T was padded up to a chunk multiple
                valid = (c_idx * t_chunk + s) < seq_len
                h_new = jnp.where(valid, h_new, h)
                c_new = jnp.where(valid, c_new, c)
            return h_new, c_new

        h, c = jax.lax.fori_loop(0, t_chunk, step,
                                 (h_ref[...], c_ref[...]), unroll=True)
        h_ref[...] = h
        c_ref[...] = c

    return kernel


def lstm_recurrence_pallas(xw_tbg, w_hh, *, t_chunk=16):
    """xw_tbg: (T, B, 4H) time-major pre-activations (x@W_ih^T + bias), float32.
    Returns (out (T, B, H), h_n (B, H), c_n (B, H))."""
    T, B, G = xw_tbg.shape
    H = G // 4
    whh_t = jnp.asarray(w_hh, jnp.float32).T                                  # (H, 4H)

    t_chunk = min(t_chunk, T)
    n_chunks = pl.cdiv(T, t_chunk)
    T_pad = n_chunks * t_chunk
    if T_pad != T:
        xw_tbg = jnp.pad(xw_tbg, ((0, T_pad - T), (0, 0), (0, 0)))

    kernel = _make_lstm_recurrence_kernel(T, t_chunk)

    cost = pl.CostEstimate(
        flops=2 * T_pad * B * H * G + 10 * T_pad * B * G,
        transcendentals=5 * T_pad * B * H,
        bytes_accessed=4 * (T_pad * B * G + T_pad * B * H + H * G + 2 * B * H))

    out, h_n, c_n = pl.pallas_call(
        kernel,
        out_shape=(jax.ShapeDtypeStruct((T_pad, B, H), jnp.float32),
                   jax.ShapeDtypeStruct((B, H), jnp.float32),
                   jax.ShapeDtypeStruct((B, H), jnp.float32)),
        grid_spec=pltpu.PrefetchScalarGridSpec(
            num_scalar_prefetch=0,
            grid=(n_chunks,),
            in_specs=[pl.BlockSpec((t_chunk, B, G), lambda c: (c, 0, 0)),
                      pl.BlockSpec((H, G), lambda c: (0, 0))],
            out_specs=[pl.BlockSpec((t_chunk, B, H), lambda c: (c, 0, 0)),
                       pl.BlockSpec((B, H), lambda c: (0, 0)),
                       pl.BlockSpec((B, H), lambda c: (0, 0))]),
        compiler_params=pltpu.CompilerParams(
            dimension_semantics=("arbitrary",),        # strictly serial over time
            vmem_limit_bytes=32 * 1024 * 1024),        # raise for large H (v5e default is 16 MiB)
        cost_estimate=cost,
    )(xw_tbg, whh_t)
    return out[:T], h_n, c_n


# ---------------------------------------------------------------------------
# Module-level forward: embedding -> dropout(eval: identity) -> LSTM (batch_first)
# ---------------------------------------------------------------------------
def encoder_lstm_forward(tokens, embedding_matrix, w_ih, w_hh, b_ih, b_hh):
    """Mirrors EncoderLSTM.forward at inference (dropout = identity).

    tokens: (B, T) int32.
    Returns output (B, T, H), (hidden (1, B, H), cell (1, B, H)).
    """
    # Hoisted input projection: project the embedding table once and gather the
    # per-token pre-activations. Exactly equivalent to x@W_ih^T in eval mode.
    # TODO(synk): training-mode dropout acts on `embedded`; in that case project
    # dropout(embedded) as one big (T*B, H) @ (H, 4H) matmul instead of the table.
    table = project_embedding_table(embedding_matrix, w_ih, b_ih, b_hh)       # (V, 4H)

    # Gather straight into time-major order: no (B,T,*) -> (T,B,*) HBM transpose
    # of the activation tensor on the input side.
    xw_tbg = jnp.take(table, jnp.transpose(tokens), axis=0)                   # (T, B, 4H)

    out_tbh, h_n, c_n = lstm_recurrence_pallas(xw_tbg, w_hh)
    output = jnp.transpose(out_tbh, (1, 0, 2))                                # (B, T, H)
    return output, (h_n[None], c_n[None])


# ---------------------------------------------------------------------------
# Pure-JAX reference (lax.scan) mirroring PyTorch nn.LSTM semantics.
# ---------------------------------------------------------------------------
def _reference_lstm(x_tbh, w_ih, w_hh, b_ih, b_hh):
    T, B, H = x_tbh.shape

    def step(carry, x_t):
        h, c = carry
        gates = x_t @ w_ih.T + h @ w_hh.T + b_ih + b_hh
        i = jax.nn.sigmoid(gates[:, 0 * H:1 * H])
        f = jax.nn.sigmoid(gates[:, 1 * H:2 * H])
        g = jnp.tanh(gates[:, 2 * H:3 * H])
        o = jax.nn.sigmoid(gates[:, 3 * H:4 * H])
        c_new = f * c + i * g
        h_new = o * jnp.tanh(c_new)
        return (h_new, c_new), h_new

    init = (jnp.zeros((B, H), jnp.float32), jnp.zeros((B, H), jnp.float32))
    (h_n, c_n), out = jax.lax.scan(step, init, x_tbh)
    return out, h_n, c_n


if __name__ == "__main__":
    key = jax.random.PRNGKey(0)
    vocab_size, hidden_size = 50, 128   # hidden chosen lane-aligned (multiple of 128)
    batch, seq = 2, 8

    k_emb, k_wih, k_whh, k_bih, k_bhh, k_tok = jax.random.split(key, 6)
    bound = 1.0 / np.sqrt(hidden_size)

    embedding_matrix = jax.random.normal(k_emb, (vocab_size, hidden_size), jnp.float32)
    w_ih = jax.random.uniform(k_wih, (4 * hidden_size, hidden_size), jnp.float32, -bound, bound)
    w_hh = jax.random.uniform(k_whh, (4 * hidden_size, hidden_size), jnp.float32, -bound, bound)
    b_ih = jax.random.uniform(k_bih, (4 * hidden_size,), jnp.float32, -bound, bound)
    b_hh = jax.random.uniform(k_bhh, (4 * hidden_size,), jnp.float32, -bound, bound)

    tokens = jax.random.randint(k_tok, (batch, seq), 0, vocab_size, jnp.int32)

    output, (hidden, cell) = encoder_lstm_forward(
        tokens, embedding_matrix, w_ih, w_hh, b_ih, b_hh)
    jax.block_until_ready((output, hidden, cell))

    # sanity-check against pure-JAX reference
    x_tbh = jnp.transpose(jnp.take(embedding_matrix, tokens, axis=0), (1, 0, 2))
    ref_out, ref_h, ref_c = _reference_lstm(x_tbh, w_ih, w_hh, b_ih, b_hh)
    np.testing.assert_allclose(np.asarray(output),
                               np.asarray(jnp.transpose(ref_out, (1, 0, 2))),
                               rtol=1e-4, atol=1e-5)
    np.testing.assert_allclose(np.asarray(hidden[0]), np.asarray(ref_h), rtol=1e-4, atol=1e-5)
    np.testing.assert_allclose(np.asarray(cell[0]), np.asarray(ref_c), rtol=1e-4, atol=1e-5)

    assert output.shape == (batch, seq, hidden_size)
    assert hidden.shape == (1, batch, hidden_size)
    assert cell.shape == (1, batch, hidden_size)
    print("KERNEL_OK")
</pallas_src>

<mosaic_0001>
module attributes {stable_mosaic.version = 11 : i64} {
  func.func @_proj_kernel(%arg0: i32, %arg1: memref<128x128xf32, #tpu.memory_space<vmem>>, %arg2: memref<128x512xf32, #tpu.memory_space<vmem>>, %arg3: memref<1x512xf32, #tpu.memory_space<vmem>>, %arg4: memref<128x512xf32, #tpu.memory_space<vmem>>) attributes {dimension_semantics = [#tpu.dimension_semantics<parallel>], iteration_bounds = array<i64: 1>, scalar_prefetch = 0 : i64, scratch_operands = 0 : i64, tpu.core_type = #tpu.core_type<tc>, window_params = [{transform_indices = @transform_0, window_bounds = array<i64: 128, 128>}, {pipeline_mode = #tpu.pipeline_mode<synchronous>, transform_indices = @transform_1, window_bounds = array<i64: 128, 512>}, {pipeline_mode = #tpu.pipeline_mode<synchronous>, transform_indices = @transform_2, window_bounds = array<i64: 1, 512>}, {transform_indices = @transform_3, window_bounds = array<i64: 128, 512>}]} {
    %c0 = arith.constant 0 : index
    %c0_0 = arith.constant 0 : index
    %0 = vector.load %arg1[%c0, %c0_0] : memref<128x128xf32, #tpu.memory_space<vmem>>, vector<128x128xf32>
    %c0_1 = arith.constant 0 : index
    %c0_2 = arith.constant 0 : index
    %1 = vector.load %arg2[%c0_1, %c0_2] : memref<128x512xf32, #tpu.memory_space<vmem>>, vector<128x512xf32>
    %cst = arith.constant dense<0.000000e+00> : vector<128x512xf32>
    %2 = tpu.matmul %0, %1, %cst {dimension_numbers = #tpu.dot_dimension_numbers<[1], [0], [0], [1], [0, 0, 1, 1], [], []>} : vector<128x128xf32>, vector<128x512xf32>, vector<128x512xf32> -> vector<128x512xf32>
    %c0_3 = arith.constant 0 : index
    %c0_4 = arith.constant 0 : index
    %3 = vector.load %arg3[%c0_3, %c0_4] : memref<1x512xf32, #tpu.memory_space<vmem>>, vector<1x512xf32>
    %4 = vector.broadcast %3 : vector<1x512xf32> to vector<128x512xf32>
    %5 = arith.addf %2, %4 : vector<128x512xf32>
    %c0_5 = arith.constant 0 : index
    %c0_6 = arith.constant 0 : index
    %6 = vector.load %arg4[%c0_5, %c0_6] : memref<128x512xf32, #tpu.memory_space<vmem>>, vector<128x512xf32>
    tpu.vector_store %arg4[%c0_5, %c0_6], %5 {strides = array<i32>} : memref<128x512xf32, #tpu.memory_space<vmem>>, vector<128x512xf32>,
    return
  }
  func.func @transform_0(%arg0: i32) -> (i32, i32) {
    %c0_i32 = arith.constant 0 : i32
    %c0_i32_0 = arith.constant 0 : i32
    return %arg0, %c0_i32 : i32, i32
  }
  func.func @transform_1(%arg0: i32) -> (i32, i32) {
    %c0_i32 = arith.constant 0 : i32
    %c0_i32_0 = arith.constant 0 : i32
    %c0_i32_1 = arith.constant 0 : i32
    return %c0_i32, %c0_i32_0 : i32, i32
  }
  func.func @transform_2(%arg0: i32) -> (i32, i32) {
    %c0_i32 = arith.constant 0 : i32
    %c0_i32_0 = arith.constant 0 : i32
    %c0_i32_1 = arith.constant 0 : i32
    return %c0_i32, %c0_i32_0 : i32, i32
  }
  func.func @transform_3(%arg0: i32) -> (i32, i32) {
    %c0_i32 = arith.constant 0 : i32
    %c0_i32_0 = arith.constant 0 : i32
    return %arg0, %c0_i32 : i32, i32
  }
}

</mosaic_0001>

<llo_original>
// kernel: tpu_custom_call.1
$region0: #{tpu_custom_call.1}
  #allocation0 [shape = 'u32[]', space=smem, size = 0x4, offset = 0x4, fixed_abs, tag = 'smem constant byte address 0x4 - core index']
  #allocation1 [shape = 'u32[72,128]{1,0:T(1,128)}', space=vmem, size = 0x9000, scoped, tag = 'internal scratch']
  %s0 = inlined_call_operand.hbm [shape: f32[128,128], index: 0, kind: input, shape index: {}]
  %s1 = inlined_call_operand.hbm [shape: f32[128,512], index: 1, kind: input, shape index: {}]
  %s2 = inlined_call_operand.hbm [shape: f32[1,512], index: 2, kind: input, shape index: {}]
  %s3 = inlined_call_operand.hbm [shape: f32[128,512], index: 3, kind: output, shape index: {}]
  %s4 = sld [smem:[#allocation0]]
  $region34: #{tpu_custom_call.1} parent=0
    _
  %s6 = ssub.s32 1, %s4
  %s7 = scalar_select 0, %s6, %s4
  $region1: #{tpu_custom_call.1} parent=0
    #allocation2 [shape = 'u8[65536]{0}', space=vmem, size = 0x10000, scoped, tag = 'input window, operand 0, single buffered']
    #allocation3 [shape = 's32[1]{0}', space=sflag, size = 0x4, scoped, tag = 'scoped memory for tpu_custom_call.1']
    #allocation4 [shape = 's32[1]{0}', space=sflag, size = 0x4, scoped, tag = 'scoped memory for tpu_custom_call.1']
    #allocation5 [shape = 'u8[262144]{0}', space=vmem, size = 0x40000, scoped, tag = 'input window, operand 1, single buffered']
    #allocation6 [shape = 's32[1]{0}', space=sflag, size = 0x4, scoped, tag = 'scoped memory for tpu_custom_call.1']
    #allocation7 [shape = 'u8[2048]{0}', space=vmem, size = 0x800, scoped, tag = 'input window, operand 2, single buffered']
    #allocation8 [shape = 'u8[262144]{0}', space=vmem, size = 0x40000, scoped, tag = 'output window, operand 0, single buffered']
    %8 = vsyncpa [#allocation3], 0
    %9 = vsyncpa [#allocation6], 0
    %10 = vsyncpa [#allocation4], 0
    // Predicated region
    $region2: #{tpu_custom_call.1} parent=1 // pred_check
      _
    $region3: #{tpu_custom_call.1} parent=1 // pred_check_branch
      %12 = sbr.rel (0) target = $region5
    $region4: #{tpu_custom_call.1} parent=1 // pred_region
      %14 = vsyncadd [#allocation3], 0
      %s15 = sshll.u32 %s0, 4
      %s16 = int_to_ptr.hbm [resolvable:$true] %s15
      %s17 = sshll.u32 [#allocation2], 4
      %s18 = int_to_ptr.vmem [resolvable:$true] %s17
      %23 = dma.hbm_to_vmem [thread:$0]  %s16, 2048, %s18, [#allocation3], 128, 128, 8
    $region5: #{tpu_custom_call.1} parent=1 // pred_fallthru
      _
    // Predicated region
    $region6: #{tpu_custom_call.1} parent=1 // pred_check
      _
    $region7: #{tpu_custom_call.1} parent=1 // pred_check_branch
      %25 = sbr.rel (0) target = $region9
    $region8: #{tpu_custom_call.1} parent=1 // pred_region
      %27 = vsyncadd [#allocation6], 0
      %s28 = sshll.u32 %s1, 4
      %s29 = int_to_ptr.hbm [resolvable:$true] %s28
      %s30 = sshll.u32 [#allocation5], 4
      %s31 = int_to_ptr.vmem [resolvable:$true] %s30
      %36 = dma.hbm_to_vmem [thread:$0]  %s29, 8192, %s31, [#allocation6], 512, 512, 32
    $region9: #{tpu_custom_call.1} parent=1 // pred_fallthru
      _
    // Predicated region
    $region10: #{tpu_custom_call.1} parent=1 // pred_check
      _
    $region11: #{tpu_custom_call.1} parent=1 // pred_check_branch
      %38 = sbr.rel (0) target = $region13
    $region12: #{tpu_custom_call.1} parent=1 // pred_region
      %40 = vsyncadd [#allocation6], 0
      %s42 = sshll.u32 %s2, 4
      %s43 = int_to_ptr.hbm [resolvable:$true] %s42
      %s44 = sshll.u32 [#allocation7], 4
      %s45 = int_to_ptr.vmem [resolvable:$true] %s44
      %47 = dma.hbm_to_vmem [thread:$0]  %s43, 64, %s45, [#allocation6]
    $region13: #{tpu_custom_call.1} parent=1 // pred_fallthru
      _
    // Predicated region
    $region14: #{tpu_custom_call.1} parent=1 // pred_check
      _
    $region15: #{tpu_custom_call.1} parent=1 // pred_check_branch
      %49 = sbr.rel (0) target = $region17
    $region16: #{tpu_custom_call.1} parent=1 // pred_region
      %51 = dma.done [#allocation3], 2048
    $region17: #{tpu_custom_call.1} parent=1 // pred_fallthru
      _
    // Predicated region
    $region18: #{tpu_custom_call.1} parent=1 // pred_check
      _
    $region19: #{tpu_custom_call.1} parent=1 // pred_check_branch
      %53 = sbr.rel (0) target = $region21
    $region20: #{tpu_custom_call.1} parent=1 // pred_region
      %55 = dma.done [#allocation6], 8192
    $region21: #{tpu_custom_call.1} parent=1 // pred_fallthru
      _
    // Predicated region
    $region22: #{tpu_custom_call.1} parent=1 // pred_check
      _
    $region23: #{tpu_custom_call.1} parent=1 // pred_check_branch
      %57 = sbr.rel (0) target = $region25
    $region24: #{tpu_custom_call.1} parent=1 // pred_region
      %59 = dma.done [#allocation6], 64
    $region25: #{tpu_custom_call.1} parent=1 // pred_fallthru
      _
    %v60 = vld [vmem:[#allocation2] sm:$0xff]
    %v61 = vld [vmem:[#allocation2 + $0x8] sm:$0xff]
    %v62 = vld [vmem:[#allocation2 + $0x10] sm:$0xff]
    %v63 = vld [vmem:[#allocation2 + $0x18] sm:$0xff]
    %v64 = vld [vmem:[#allocation2 + $0x20] sm:$0xff]
    %v65 = vld [vmem:[#allocation2 + $0x28] sm:$0xff]
    %v66 = vld [vmem:[#allocation2 + $0x30] sm:$0xff]
    %v67 = vld [vmem:[#allocation2 + $0x38] sm:$0xff]
    %v68 = vld [vmem:[#allocation2 + $0x40] sm:$0xff]
    %v69 = vld [vmem:[#allocation2 + $0x48] sm:$0xff]
    %v70 = vld [vmem:[#allocation2 + $0x50] sm:$0xff]
    %v71 = vld [vmem:[#allocation2 + $0x58] sm:$0xff]
    %v72 = vld [vmem:[#allocation2 + $0x60] sm:$0xff]
    %v73 = vld [vmem:[#allocation2 + $0x68] sm:$0xff]
    %v74 = vld [vmem:[#allocation2 + $0x70] sm:$0xff]
    %v75 = vld [vmem:[#allocation2 + $0x78] sm:$0xff]
    %v76 = vld [vmem:[#allocation5] sm:$0xff]
    %v77 = vld [vmem:[#allocation5 + $0x8] sm:$0xff]
    %v78 = vld [vmem:[#allocation5 + $0x10] sm:$0xff]
    %v79 = vld [vmem:[#allocation5 + $0x18] sm:$0xff]
    %v80 = vld [vmem:[#allocation5 + $0x20] sm:$0xff]
    %v81 = vld [vmem:[#allocation5 + $0x28] sm:$0xff]
    %v82 = vld [vmem:[#allocation5 + $0x30] sm:$0xff]
    %v83 = vld [vmem:[#allocation5 + $0x38] sm:$0xff]
    %v84 = vld [vmem:[#allocation5 + $0x40] sm:$0xff]
    %v85 = vld [vmem:[#allocation5 + $0x48] sm:$0xff]
    %v86 = vld [vmem:[#allocation5 + $0x50] sm:$0xff]
    %v87 = vld [vmem:[#allocation5 + $0x58] sm:$0xff]
    %v88 = vld [vmem:[#allocation5 + $0x60] sm:$0xff]
    %v89 = vld [vmem:[#allocation5 + $0x68] sm:$0xff]
    %v90 = vld [vmem:[#allocation5 + $0x70] sm:$0xff]
    %v91 = vld [vmem:[#allocation5 + $0x78] sm:$0xff]
    %v92 = vld [vmem:[#allocation5 + $0x80] sm:$0xff]
    %v93 = vld [vmem:[#allocation5 + $0x88] sm:$0xff]
    %v94 = vld [vmem:[#allocation5 + $0x90] sm:$0xff]
    %v95 = vld [vmem:[#allocation5 + $0x98] sm:$0xff]
    %v96 = vld [vmem:[#allocation5 + $0xa0] sm:$0xff]
    %v97 = vld [vmem:[#allocation5 + $0xa8] sm:$0xff]
    %v98 = vld [vmem:[#allocation5 + $0xb0] sm:$0xff]
    %v99 = vld [vmem:[#allocation5 + $0xb8] sm:$0xff]
    %v100 = vld [vmem:[#allocation5 + $0xc0] sm:$0xff]
    %v101 = vld [vmem:[#allocation5 + $0xc8] sm:$0xff]
    %v102 = vld [vmem:[#allocation5 + $0xd0] sm:$0xff]
    %v103 = vld [vmem:[#allocation5 + $0xd8] sm:$0xff]
    %v104 = vld [vmem:[#allocation5 + $0xe0] sm:$0xff]
    %v105 = vld [vmem:[#allocation5 + $0xe8] sm:$0xff]
    %v106 = vld [vmem:[#allocation5 + $0xf0] sm:$0xff]
    %v107 = vld [vmem:[#allocation5 + $0xf8] sm:$0xff]
    %v108 = vld [vmem:[#allocation5 + $0x100] sm:$0xff]
    %v109 = vld [vmem:[#allocation5 + $0x108] sm:$0xff]
    %v110 = vld [vmem:[#allocation5 + $0x110] sm:$0xff]
    %v111 = vld [vmem:[#allocation5 + $0x118] sm:$0xff]
    %v112 = vld [vmem:[#allocation5 + $0x120] sm:$0xff]
    %v113 = vld [vmem:[#allocation5 + $0x128] sm:$0xff]
    %v114 = vld [vmem:[#allocation5 + $0x130] sm:$0xff]
    %v115 = vld [vmem:[#allocation5 + $0x138] sm:$0xff]
    %v116 = vld [vmem:[#allocation5 + $0x140] sm:$0xff]
    %v117 = vld [vmem:[#allocation5 + $0x148] sm:$0xff]
    %v118 = vld [vmem:[#allocation5 + $0x150] sm:$0xff]
    %v119 = vld [vmem:[#allocation5 + $0x158] sm:$0xff]
    %v120 = vld [vmem:[#allocation5 + $0x160] sm:$0xff]
    %v121 = vld [vmem:[#allocation5 + $0x168] sm:$0xff]
    %v122 = vld [vmem:[#allocation5 + $0x170] sm:$0xff]
    %v123 = vld [vmem:[#allocation5 + $0x178] sm:$0xff]
    %v124 = vld [vmem:[#allocation5 + $0x180] sm:$0xff]
    %v125 = vld [vmem:[#allocation5 + $0x188] sm:$0xff]
    %v126 = vld [vmem:[#allocation5 + $0x190] sm:$0xff]
    %v127 = vld [vmem:[#allocation5 + $0x198] sm:$0xff]
    %v128 = vld [vmem:[#allocation5 + $0x1a0] sm:$0xff]
    %v129 = vld [vmem:[#allocation5 + $0x1a8] sm:$0xff]
    %v130 = vld [vmem:[#allocation5 + $0x1b0] sm:$0xff]
    %v131 = vld [vmem:[#allocation5 + $0x1b8] sm:$0xff]
    %v132 = vld [vmem:[#allocation5 + $0x1c0] sm:$0xff]
    %v133 = vld [vmem:[#allocation5 + $0x1c8] sm:$0xff]
    %v134 = vld [vmem:[#allocation5 + $0x1d0] sm:$0xff]
    %v135 = vld [vmem:[#allocation5 + $0x1d8] sm:$0xff]
    %v136 = vld [vmem:[#allocation5 + $0x1e0] sm:$0xff]
    %v137 = vld [vmem:[#allocation5 + $0x1e8] sm:$0xff]
    %v138 = vld [vmem:[#allocation5 + $0x1f0] sm:$0xff]
    %v139 = vld [vmem:[#allocation5 + $0x1f8] sm:$0xff]
    %v140 = vld [vmem:[#allocation7] sm:$0xf]
    %v142 = vperm.slane %v140, 0
    %v143 = vperm.slane %v140, 1
    %v144 = vperm.slane %v140, 2
    %v145 = vperm.slane %v140, 3
    %150 = vmatpush.msra.mxu0 %v136
    %151 = vmatpush.msra.mxu0 %v132
    %152 = vmatpush.msra.mxu0 %v128
    %153 = vmatpush.msra.mxu0 %v124
    %154 = vmatpush.msra.mxu0 %v120
    %155 = vmatpush.msra.mxu0 %v116
    %156 = vmatpush.msra.mxu0 %v112
    %157 = vmatpush.msra.mxu0 %v108
    %158 = vmatpush.msra.mxu0 %v104
    %159 = vmatpush.msra.mxu0 %v100
    %160 = vmatpush.msra.mxu0 %v96
    %161 = vmatpush.msra.mxu0 %v92
    %162 = vmatpush.msra.mxu0 %v88
    %163 = vmatpush.msra.mxu0 %v84
    %164 = vmatpush.msra.mxu0 %v80
    %165 = vmatpush.msra.mxu0 %v76
    %166 = vmatmul.f32.gmra.mxu0 %v60
    %v167 = vpop.f32.mrf.mxu0
    %v168 = vadd.f32 %v142, %v167
    %169 = vmatmul.f32.gmra.mxu0 %v61
    %v170 = vpop.f32.mrf.mxu0
    %v171 = vadd.f32 %v142, %v170
    %172 = vmatmul.f32.gmra.mxu0 %v62
    %v173 = vpop.f32.mrf.mxu0
    %v174 = vadd.f32 %v142, %v173
    %175 = vmatmul.f32.gmra.mxu0 %v63
    %v176 = vpop.f32.mrf.mxu0
    %v177 = vadd.f32 %v142, %v176
    %178 = vmatmul.f32.gmra.mxu0 %v64
    %v179 = vpop.f32.mrf.mxu0
    %v180 = vadd.f32 %v142, %v179
    %181 = vmatmul.f32.gmra.mxu0 %v65
    %v182 = vpop.f32.mrf.mxu0
    %v183 = vadd.f32 %v142, %v182
    %184 = vmatmul.f32.gmra.mxu0 %v66
    %v185 = vpop.f32.mrf.mxu0
    %v186 = vadd.f32 %v142, %v185
    %187 = vmatmul.f32.gmra.mxu0 %v67
    %v188 = vpop.f32.mrf.mxu0
    %v189 = vadd.f32 %v142, %v188
    %190 = vmatmul.f32.gmra.mxu0 %v68
    %v191 = vpop.f32.mrf.mxu0
    %v192 = vadd.f32 %v142, %v191
    %193 = vmatmul.f32.gmra.mxu0 %v69
    %v194 = vpop.f32.mrf.mxu0
    %v195 = vadd.f32 %v142, %v194
    %196 = vmatmul.f32.gmra.mxu0 %v70
    %v197 = vpop.f32.mrf.mxu0
    %v198 = vadd.f32 %v142, %v197
    %199 = vmatmul.f32.gmra.mxu0 %v71
    %v200 = vpop.f32.mrf.mxu0
    %v201 = vadd.f32 %v142, %v200
    %202 = vmatmul.f32.gmra.mxu0 %v72
    %v203 = vpop.f32.mrf.mxu0
    %v204 = vadd.f32 %v142, %v203
    %205 = vmatmul.f32.gmra.mxu0 %v73
    %v206 = vpop.f32.mrf.mxu0
    %v207 = vadd.f32 %v142, %v206
    %208 = vmatmul.f32.gmra.mxu0 %v74
    %v209 = vpop.f32.mrf.mxu0
    %v210 = vadd.f32 %v142, %v209
    %211 = vmatmul.f32.gmra.mxu0 %v75
    %v212 = vpop.f32.mrf.mxu0
    %v213 = vadd.f32 %v142, %v212
    %214 = vdwg.mxu0
    %215 = vmatpush.msra.mxu0 %v137
    %216 = vmatpush.msra.mxu0 %v133
    %217 = vmatpush.msra.mxu0 %v129
    %218 = vmatpush.msra.mxu0 %v125
    %219 = vmatpush.msra.mxu0 %v121
    %220 = vmatpush.msra.mxu0 %v117
    %221 = vmatpush.msra.mxu0 %v113
    %222 = vmatpush.msra.mxu0 %v109
    %223 = vmatpush.msra.mxu0 %v105
    %224 = vmatpush.msra.mxu0 %v101
    %225 = vmatpush.msra.mxu0 %v97
    %226 = vmatpush.msra.mxu0 %v93
    %227 = vmatpush.msra.mxu0 %v89
    %228 = vmatpush.msra.mxu0 %v85
    %229 = vmatpush.msra.mxu0 %v81
    %230 = vmatpush.msra.mxu0 %v77
    %231 = vmatmul.f32.gmra.mxu0 %v60
    %v232 = vpop.f32.mrf.mxu0
    %v233 = vadd.f32 %v143, %v232
    %234 = vmatmul.f32.gmra.mxu0 %v61
    %v235 = vpop.f32.mrf.mxu0
    %v236 = vadd.f32 %v143, %v235
    %237 = vmatmul.f32.gmra.mxu0 %v62
    %v238 = vpop.f32.mrf.mxu0
    %v239 = vadd.f32 %v143, %v238
    %240 = vmatmul.f32.gmra.mxu0 %v63
    %v241 = vpop.f32.mrf.mxu0
    %v242 = vadd.f32 %v143, %v241
    %243 = vmatmul.f32.gmra.mxu0 %v64
    %v244 = vpop.f32.mrf.mxu0
    %v245 = vadd.f32 %v143, %v244
    %246 = vmatmul.f32.gmra.mxu0 %v65
    %v247 = vpop.f32.mrf.mxu0
    %v248 = vadd.f32 %v143, %v247
    %249 = vmatmul.f32.gmra.mxu0 %v66
    %v250 = vpop.f32.mrf.mxu0
    %v251 = vadd.f32 %v143, %v250
    %252 = vmatmul.f32.gmra.mxu0 %v67
    %v253 = vpop.f32.mrf.mxu0
    %v254 = vadd.f32 %v143, %v253
    %255 = vmatmul.f32.gmra.mxu0 %v68
    %v256 = vpop.f32.mrf.mxu0
    %v257 = vadd.f32 %v143, %v256
    %258 = vmatmul.f32.gmra.mxu0 %v69
    %v259 = vpop.f32.mrf.mxu0
    %v260 = vadd.f32 %v143, %v259
    %261 = vmatmul.f32.gmra.mxu0 %v70
    %v262 = vpop.f32.mrf.mxu0
    %v263 = vadd.f32 %v143, %v262
    %264 = vmatmul.f32.gmra.mxu0 %v71
    %v265 = vpop.f32.mrf.mxu0
    %v266 = vadd.f32 %v143, %v265
    %267 = vmatmul.f32.gmra.mxu0 %v72
    %v268 = vpop.f32.mrf.mxu0
    %v269 = vadd.f32 %v143, %v268
    %270 = vmatmul.f32.gmra.mxu0 %v73
    %v271 = vpop.f32.mrf.mxu0
    %v272 = vadd.f32 %v143, %v271
    %273 = vmatmul.f32.gmra.mxu0 %v74
    %v274 = vpop.f32.mrf.mxu0
    %v275 = vadd.f32 %v143, %v274
    %276 = vmatmul.f32.gmra.mxu0 %v75
    %v277 = vpop.f32.mrf.mxu0
    %v278 = vadd.f32 %v143, %v277
    %279 = vdwg.mxu0
    %280 = vmatpush.msra.mxu0 %v138
    %281 = vmatpush.msra.mxu0 %v134
    %282 = vmatpush.msra.mxu0 %v130
    %283 = vmatpush.msra.mxu0 %v126
    %284 = vmatpush.msra.mxu0 %v122
    %285 = vmatpush.msra.mxu0 %v118
    %286 = vmatpush.msra.mxu0 %v114
    %287 = vmatpush.msra.mxu0 %v110
    %288 = vmatpush.msra.mxu0 %v106
    %289 = vmatpush.msra.mxu0 %v102
    %290 = vmatpush.msra.mxu0 %v98
    %291 = vmatpush.msra.mxu0 %v94
    %292 = vmatpush.msra.mxu0 %v90
    %293 = vmatpush.msra.mxu0 %v86
    %294 = vmatpush.msra.mxu0 %v82
    %295 = vmatpush.msra.mxu0 %v78
    %296 = vmatmul.f32.gmra.mxu0 %v60
    %v297 = vpop.f32.mrf.mxu0
    %v298 = vadd.f32 %v144, %v297
    %299 = vmatmul.f32.gmra.mxu0 %v61
    %v300 = vpop.f32.mrf.mxu0
    %v301 = vadd.f32 %v144, %v300
    %302 = vmatmul.f32.gmra.mxu0 %v62
    %v303 = vpop.f32.mrf.mxu0
    %v304 = vadd.f32 %v144, %v303
    %305 = vmatmul.f32.gmra.mxu0 %v63
    %v306 = vpop.f32.mrf.mxu0
    %v307 = vadd.f32 %v144, %v306
    %308 = vmatmul.f32.gmra.mxu0 %v64
    %v309 = vpop.f32.mrf.mxu0
    %v310 = vadd.f32 %v144, %v309
    %311 = vmatmul.f32.gmra.mxu0 %v65
    %v312 = vpop.f32.mrf.mxu0
    %v313 = vadd.f32 %v144, %v312
    %314 = vmatmul.f32.gmra.mxu0 %v66
    %v315 = vpop.f32.mrf.mxu0
    %v316 = vadd.f32 %v144, %v315
    %317 = vmatmul.f32.gmra.mxu0 %v67
    %v318 = vpop.f32.mrf.mxu0
    %v319 = vadd.f32 %v144, %v318
    %320 = vmatmul.f32.gmra.mxu0 %v68
    %v321 = vpop.f32.mrf.mxu0
    %v322 = vadd.f32 %v144, %v321
    %323 = vmatmul.f32.gmra.mxu0 %v69
    %v324 = vpop.f32.mrf.mxu0
    %v325 = vadd.f32 %v144, %v324
    %326 = vmatmul.f32.gmra.mxu0 %v70
    %v327 = vpop.f32.mrf.mxu0
    %v328 = vadd.f32 %v144, %v327
    %329 = vmatmul.f32.gmra.mxu0 %v71
    %v330 = vpop.f32.mrf.mxu0
    %v331 = vadd.f32 %v144, %v330
    %332 = vmatmul.f32.gmra.mxu0 %v72
    %v333 = vpop.f32.mrf.mxu0
    %v334 = vadd.f32 %v144, %v333
    %335 = vmatmul.f32.gmra.mxu0 %v73
    %v336 = vpop.f32.mrf.mxu0
    %v337 = vadd.f32 %v144, %v336
    %338 = vmatmul.f32.gmra.mxu0 %v74
    %v339 = vpop.f32.mrf.mxu0
    %v340 = vadd.f32 %v144, %v339
    %341 = vmatmul.f32.gmra.mxu0 %v75
    %v342 = vpop.f32.mrf.mxu0
    %v343 = vadd.f32 %v144, %v342
    %344 = vdwg.mxu0
    %345 = vmatpush.msra.mxu0 %v139
    %346 = vmatpush.msra.mxu0 %v135
    %347 = vmatpush.msra.mxu0 %v131
    %348 = vmatpush.msra.mxu0 %v127
    %349 = vmatpush.msra.mxu0 %v123
    %350 = vmatpush.msra.mxu0 %v119
    %351 = vmatpush.msra.mxu0 %v115
    %352 = vmatpush.msra.mxu0 %v111
    %353 = vmatpush.msra.mxu0 %v107
    %354 = vmatpush.msra.mxu0 %v103
    %355 = vmatpush.msra.mxu0 %v99
    %356 = vmatpush.msra.mxu0 %v95
    %357 = vmatpush.msra.mxu0 %v91
    %358 = vmatpush.msra.mxu0 %v87
    %359 = vmatpush.msra.mxu0 %v83
    %360 = vmatpush.msra.mxu0 %v79
    %361 = vmatmul.f32.gmra.mxu0 %v60
    %v362 = vpop.f32.mrf.mxu0
    %v363 = vadd.f32 %v145, %v362
    %364 = vmatmul.f32.gmra.mxu0 %v61
    %v365 = vpop.f32.mrf.mxu0
    %v366 = vadd.f32 %v145, %v365
    %367 = vmatmul.f32.gmra.mxu0 %v62
    %v368 = vpop.f32.mrf.mxu0
    %v369 = vadd.f32 %v145, %v368
    %370 = vmatmul.f32.gmra.mxu0 %v63
    %v371 = vpop.f32.mrf.mxu0
    %v372 = vadd.f32 %v145, %v371
    %373 = vmatmul.f32.gmra.mxu0 %v64
    %v374 = vpop.f32.mrf.mxu0
    %v375 = vadd.f32 %v145, %v374
    %376 = vmatmul.f32.gmra.mxu0 %v65
    %v377 = vpop.f32.mrf.mxu0
    %v378 = vadd.f32 %v145, %v377
    %379 = vmatmul.f32.gmra.mxu0 %v66
    %v380 = vpop.f32.mrf.mxu0
    %v381 = vadd.f32 %v145, %v380
    %382 = vmatmul.f32.gmra.mxu0 %v67
    %v383 = vpop.f32.mrf.mxu0
    %v384 = vadd.f32 %v145, %v383
    %385 = vmatmul.f32.gmra.mxu0 %v68
    %v386 = vpop.f32.mrf.mxu0
    %v387 = vadd.f32 %v145, %v386
    %388 = vmatmul.f32.gmra.mxu0 %v69
    %v389 = vpop.f32.mrf.mxu0
    %v390 = vadd.f32 %v145, %v389
    %391 = vmatmul.f32.gmra.mxu0 %v70
    %v392 = vpop.f32.mrf.mxu0
    %v393 = vadd.f32 %v145, %v392
    %394 = vmatmul.f32.gmra.mxu0 %v71
    %v395 = vpop.f32.mrf.mxu0
    %v396 = vadd.f32 %v145, %v395
    %397 = vmatmul.f32.gmra.mxu0 %v72
    %v398 = vpop.f32.mrf.mxu0
    %v399 = vadd.f32 %v145, %v398
    %400 = vmatmul.f32.gmra.mxu0 %v73
    %v401 = vpop.f32.mrf.mxu0
    %v402 = vadd.f32 %v145, %v401
    %403 = vmatmul.f32.gmra.mxu0 %v74
    %v404 = vpop.f32.mrf.mxu0
    %v405 = vadd.f32 %v145, %v404
    %406 = vmatmul.f32.gmra.mxu0 %v75
    %v407 = vpop.f32.mrf.mxu0
    %v408 = vadd.f32 %v145, %v407
    %409 = vdwg.mxu0
    %410 = vst [vmem:[#allocation8] sm:$0xff] %v168
    %411 = vst [vmem:[#allocation8 + $0x8] sm:$0xff] %v233
    %412 = vst [vmem:[#allocation8 + $0x10] sm:$0xff] %v298
    %413 = vst [vmem:[#allocation8 + $0x18] sm:$0xff] %v363
    %414 = vst [vmem:[#allocation8 + $0x20] sm:$0xff] %v171
    %415 = vst [vmem:[#allocation8 + $0x28] sm:$0xff] %v236
    %416 = vst [vmem:[#allocation8 + $0x30] sm:$0xff] %v301
    %417 = vst [vmem:[#allocation8 + $0x38] sm:$0xff] %v366
    %418 = vst [vmem:[#allocation8 + $0x40] sm:$0xff] %v174
    %419 = vst [vmem:[#allocation8 + $0x48] sm:$0xff] %v239
    %420 = vst [vmem:[#allocation8 + $0x50] sm:$0xff] %v304
    %421 = vst [vmem:[#allocation8 + $0x58] sm:$0xff] %v369
    %422 = vst [vmem:[#allocation8 + $0x60] sm:$0xff] %v177
    %423 = vst [vmem:[#allocation8 + $0x68] sm:$0xff] %v242
    %424 = vst [vmem:[#allocation8 + $0x70] sm:$0xff] %v307
    %425 = vst [vmem:[#allocation8 + $0x78] sm:$0xff] %v372
    %426 = vst [vmem:[#allocation8 + $0x80] sm:$0xff] %v180
    %427 = vst [vmem:[#allocation8 + $0x88] sm:$0xff] %v245
    %428 = vst [vmem:[#allocation8 + $0x90] sm:$0xff] %v310
    %429 = vst [vmem:[#allocation8 + $0x98] sm:$0xff] %v375
    %430 = vst [vmem:[#allocation8 + $0xa0] sm:$0xff] %v183
    %431 = vst [vmem:[#allocation8 + $0xa8] sm:$0xff] %v248
    %432 = vst [vmem:[#allocation8 + $0xb0] sm:$0xff] %v313
    %433 = vst [vmem:[#allocation8 + $0xb8] sm:$0xff] %v378
    %434 = vst [vmem:[#allocation8 + $0xc0] sm:$0xff] %v186
    %435 = vst [vmem:[#allocation8 + $0xc8] sm:$0xff] %v251
    %436 = vst [vmem:[#allocation8 + $0xd0] sm:$0xff] %v316
    %437 = vst [vmem:[#allocation8 + $0xd8] sm:$0xff] %v381
    %438 = vst [vmem:[#allocation8 + $0xe0] sm:$0xff] %v189
    %439 = vst [vmem:[#allocation8 + $0xe8] sm:$0xff] %v254
    %440 = vst [vmem:[#allocation8 + $0xf0] sm:$0xff] %v319
    %441 = vst [vmem:[#allocation8 + $0xf8] sm:$0xff] %v384
    %442 = vst [vmem:[#allocation8 + $0x100] sm:$0xff] %v192
    %443 = vst [vmem:[#allocation8 + $0x108] sm:$0xff] %v257
    %444 = vst [vmem:[#allocation8 + $0x110] sm:$0xff] %v322
    %445 = vst [vmem:[#allocation8 + $0x118] sm:$0xff] %v387
    %446 = vst [vmem:[#allocation8 + $0x120] sm:$0xff] %v195
    %447 = vst [vmem:[#allocation8 + $0x128] sm:$0xff] %v260
    %448 = vst [vmem:[#allocation8 + $0x130] sm:$0xff] %v325
    %449 = vst [vmem:[#allocation8 + $0x138] sm:$0xff] %v390
    %450 = vst [vmem:[#allocation8 + $0x140] sm:$0xff] %v198
    %451 = vst [vmem:[#allocation8 + $0x148] sm:$0xff] %v263
    %452 = vst [vmem:[#allocation8 + $0x150] sm:$0xff] %v328
    %453 = vst [vmem:[#allocation8 + $0x158] sm:$0xff] %v393
    %454 = vst [vmem:[#allocation8 + $0x160] sm:$0xff] %v201
    %455 = vst [vmem:[#allocation8 + $0x168] sm:$0xff] %v266
    %456 = vst [vmem:[#allocation8 + $0x170] sm:$0xff] %v331
    %457 = vst [vmem:[#allocation8 + $0x178] sm:$0xff] %v396
    %458 = vst [vmem:[#allocation8 + $0x180] sm:$0xff] %v204
    %459 = vst [vmem:[#allocation8 + $0x188] sm:$0xff] %v269
    %460 = vst [vmem:[#allocation8 + $0x190] sm:$0xff] %v334
    %461 = vst [vmem:[#allocation8 + $0x198] sm:$0xff] %v399
    %462 = vst [vmem:[#allocation8 + $0x1a0] sm:$0xff] %v207
    %463 = vst [vmem:[#allocation8 + $0x1a8] sm:$0xff] %v272
    %464 = vst [vmem:[#allocation8 + $0x1b0] sm:$0xff] %v337
    %465 = vst [vmem:[#allocation8 + $0x1b8] sm:$0xff] %v402
    %466 = vst [vmem:[#allocation8 + $0x1c0] sm:$0xff] %v210
    %467 = vst [vmem:[#allocation8 + $0x1c8] sm:$0xff] %v275
    %468 = vst [vmem:[#allocation8 + $0x1d0] sm:$0xff] %v340
    %469 = vst [vmem:[#allocation8 + $0x1d8] sm:$0xff] %v405
    %470 = vst [vmem:[#allocation8 + $0x1e0] sm:$0xff] %v213
    %471 = vst [vmem:[#allocation8 + $0x1e8] sm:$0xff] %v278
    %472 = vst [vmem:[#allocation8 + $0x1f0] sm:$0xff] %v343
    %473 = vst [vmem:[#allocation8 + $0x1f8] sm:$0xff] %v408
    // Predicated region
    $region26: #{tpu_custom_call.1} parent=1 // pred_check
      _
    $region27: #{tpu_custom_call.1} parent=1 // pred_check_branch
      %475 = sbr.rel (0) target = $region29
    $region28: #{tpu_custom_call.1} parent=1 // pred_region
      %477 = vsyncadd [#allocation4], 0
      %s478 = sshll.u32 [#allocation8], 4
      %s479 = int_to_ptr.vmem [resolvable:$true] %s478
      %s480 = sshll.u32 %s3, 4
      %s481 = int_to_ptr.hbm [resolvable:$true] %s480
      %486 = dma.vmem_to_hbm [thread:$0]  %s479, 8192, %s481, [#allocation4], 512, 512, 32
    $region29: #{tpu_custom_call.1} parent=1 // pred_fallthru
      _
    // Predicated region
    $region30: #{tpu_custom_call.1} parent=1 // pred_check
      _
    $region31: #{tpu_custom_call.1} parent=1 // pred_check_branch
      %488 = sbr.rel (0) target = $region33
    $region32: #{tpu_custom_call.1} parent=1 // pred_region
      %490 = dma.done [#allocation4], 8192
    $region33: #{tpu_custom_call.1} parent=1 // pred_fallthru
      _
    %491 = vsyncpa [#allocation3], 1
    %492 = vsyncpa [#allocation6], 1
    %493 = vsyncpa [#allocation4], 1

</llo_original>
